<compile_context>
chip_gen: v6e
topology: v6e:2x2x1
jax: 0.10.0
libtpu: 0.0.40
codegen_flags: <defaults>
</compile_context>

<pallas_src>
import jax
import jax.numpy as jnp
from jax.experimental import pallas as pl
from jax.experimental.pallas import tpu as pltpu


def _noise_injection_kernel(w_ref, img_ref, noise_ref, out_ref):
    # w_ref:     SMEM scalar, shape (1,)
    # img_ref:   VMEM block (1, c_tile, hw_tile)
    # noise_ref: VMEM block (1, 1, hw_tile)  -> broadcast over channel axis
    w = w_ref[0].astype(jnp.float32)
    img = img_ref[...].astype(jnp.float32)
    nse = noise_ref[...].astype(jnp.float32)
    out_ref[...] = (img + w * nse).astype(out_ref.dtype)


def _choose_tiles(C, HW, itemsize, target_bytes=2 << 20):
    """Pick (c_tile, hw_tile) obeying the (8,128) rule, ~target_bytes per tile."""
    target_elems = max(1, target_bytes // itemsize)

    # Lane axis: largest multiple of 128 that divides HW (or full HW if not
    # 128-divisible / already small enough).
    if HW % 128 != 0 or HW <= target_elems:
        hw_tile = HW if HW % 128 != 0 else min(HW, _largest_div(HW, 128, target_elems))
    else:
        hw_tile = _largest_div(HW, 128, target_elems)

    # Sublane-ish axis (channels): multiple of 8 dividing C (or full C).
    c_cap = max(1, target_elems // hw_tile)
    if C % 8 != 0 or C <= c_cap:
        c_tile = C
    else:
        c_tile = _largest_div(C, 8, c_cap)
    return c_tile, hw_tile


def _largest_div(total, align, cap):
    """Largest d <= cap with d % align == 0 and total % d == 0 (falls back to align/total)."""
    if total % align != 0:
        return total
    best = align
    d = align
    cap = max(cap, align)
    while d <= cap and d <= total:
        if total % d == 0:
            best = d
        d += align
    return best


def noise_injection(image, weight, noise=None, *, key=None):
    """image: (B, C, H, W); weight: scalar / shape-(1,) param; noise: (B,1,H,W) or None."""
    B, C, H, W = image.shape
    if noise is None:
        if key is None:
            key = jax.random.PRNGKey(0)
        noise = jax.random.normal(key, (B, 1, H, W), dtype=image.dtype)

    HW = H * W
    img2 = image.reshape(B, C, HW)          # lane-dense layout
    noise2 = noise.reshape(B, 1, HW)
    weight = jnp.asarray(weight, dtype=jnp.float32).reshape((1,))

    c_tile, hw_tile = _choose_tiles(C, HW, jnp.dtype(image.dtype).itemsize)
    grid = (B, pl.cdiv(C, c_tile), pl.cdiv(HW, hw_tile))

    out = pl.pallas_call(
        _noise_injection_kernel,
        out_shape=jax.ShapeDtypeStruct((B, C, HW), image.dtype),
        grid_spec=pltpu.PrefetchScalarGridSpec(
            num_scalar_prefetch=0,
            grid=grid,
            in_specs=[
                pl.BlockSpec(memory_space=pltpu.SMEM),                      # weight
                pl.BlockSpec((1, c_tile, hw_tile), lambda b, ci, hi: (b, ci, hi)),  # image
                pl.BlockSpec((1, 1, hw_tile), lambda b, ci, hi: (b, 0, hi)),        # noise (reused over ci)
            ],
            out_specs=pl.BlockSpec((1, c_tile, hw_tile), lambda b, ci, hi: (b, ci, hi)),
        ),
        compiler_params=pltpu.CompilerParams(
            dimension_semantics=("parallel", "parallel", "parallel"),
        ),
    )(weight, img2, noise2)
    return out.reshape(B, C, H, W)


if __name__ == "__main__":
    key = jax.random.PRNGKey(0)
    k_img, k_noise, k_big = jax.random.split(key, 3)

    # --- Small shape matching the module's typical early-layer usage ---
    B, C, H, W = 2, 4, 16, 16
    image = jax.random.normal(k_img, (B, C, H, W), dtype=jnp.float32)

    # Parameter per module __init__: torch.zeros(1)
    weight_param = jnp.zeros((1,), dtype=jnp.float32)

    # Path 1: noise=None (noise generated in wrapper, weight=0 -> identity)
    out0 = noise_injection(image, weight_param, noise=None, key=k_noise)
    jax.block_until_ready(out0)
    assert jnp.allclose(out0, image), "weight=0 path should be identity"

    # Path 2: explicit noise with a non-zero weight (broadcast over channels)
    noise = jax.random.normal(k_noise, (B, 1, H, W), dtype=jnp.float32)
    w = jnp.asarray([0.75], dtype=jnp.float32)
    out1 = noise_injection(image, w, noise=noise)
    jax.block_until_ready(out1)
    ref1 = image + w[0] * noise
    assert jnp.allclose(out1, ref1, atol=1e-6, rtol=1e-6), "mismatch vs reference (small)"

    # Path 3: larger shape that exercises channel tiling (grid splits C)
    B2, C2, H2, W2 = 2, 256, 64, 64
    image2 = jax.random.normal(k_big, (B2, C2, H2, W2), dtype=jnp.float32)
    noise2 = jax.random.normal(k_noise, (B2, 1, H2, W2), dtype=jnp.float32)
    out2 = noise_injection(image2, w, noise=noise2)
    jax.block_until_ready(out2)
    ref2 = image2 + w[0] * noise2
    assert jnp.allclose(out2, ref2, atol=1e-6, rtol=1e-6), "mismatch vs reference (tiled)"

    print("KERNEL_OK")
</pallas_src>

<mosaic_0001>
module attributes {stable_mosaic.version = 11 : i64} {
  func.func @_noise_injection_kernel(%arg0: i32, %arg1: i32, %arg2: i32, %arg3: memref<1xf32, #tpu.memory_space<smem>>, %arg4: memref<1x4x256xf32, #tpu.memory_space<vmem>>, %arg5: memref<1x1x256xf32, #tpu.memory_space<vmem>>, %arg6: memref<1x4x256xf32, #tpu.memory_space<vmem>>) attributes {dimension_semantics = [#tpu.dimension_semantics<parallel>, #tpu.dimension_semantics<parallel>, #tpu.dimension_semantics<parallel>], iteration_bounds = array<i64: 2, 1, 1>, scalar_prefetch = 0 : i64, scratch_operands = 0 : i64, tpu.core_type = #tpu.core_type<tc>, window_params = [{transform_indices = @transform_0, window_bounds = array<i64: 1>}, {transform_indices = @transform_1, window_bounds = array<i64: 1, 4, 256>}, {transform_indices = @transform_2, window_bounds = array<i64: 1, 1, 256>}, {transform_indices = @transform_3, window_bounds = array<i64: 1, 4, 256>}]} {
    %c0 = arith.constant 0 : index
    %0 = memref.load %arg3[%c0] : memref<1xf32, #tpu.memory_space<smem>>
    %c0_0 = arith.constant 0 : index
    %c0_1 = arith.constant 0 : index
    %c0_2 = arith.constant 0 : index
    %1 = vector.load %arg4[%c0_0, %c0_1, %c0_2] : memref<1x4x256xf32, #tpu.memory_space<vmem>>, vector<1x4x256xf32>
    %c0_3 = arith.constant 0 : index
    %c0_4 = arith.constant 0 : index
    %c0_5 = arith.constant 0 : index
    %2 = vector.load %arg5[%c0_3, %c0_4, %c0_5] : memref<1x1x256xf32, #tpu.memory_space<vmem>>, vector<1x1x256xf32>
    %3 = vector.broadcast %0 : f32 to vector<1x1x256xf32>
    %4 = arith.mulf %3, %2 : vector<1x1x256xf32>
    %5 = vector.broadcast %4 : vector<1x1x256xf32> to vector<1x4x256xf32>
    %6 = arith.addf %1, %5 : vector<1x4x256xf32>
    %c0_6 = arith.constant 0 : index
    %c0_7 = arith.constant 0 : index
    %c0_8 = arith.constant 0 : index
    %7 = vector.load %arg6[%c0_6, %c0_7, %c0_8] : memref<1x4x256xf32, #tpu.memory_space<vmem>>, vector<1x4x256xf32>
    tpu.vector_store %arg6[%c0_6, %c0_7, %c0_8], %6 {strides = array<i32>} : memref<1x4x256xf32, #tpu.memory_space<vmem>>, vector<1x4x256xf32>,
    return
  }
  func.func @transform_0(%arg0: i32, %arg1: i32, %arg2: i32) -> i32 {
    %c0_i32 = arith.constant 0 : i32
    %c0_i32_0 = arith.constant 0 : i32
    return %c0_i32 : i32
  }
  func.func @transform_1(%arg0: i32, %arg1: i32, %arg2: i32) -> (i32, i32, i32) {
    %c0_i32 = arith.constant 0 : i32
    return %arg0, %arg1, %arg2 : i32, i32, i32
  }
  func.func @transform_2(%arg0: i32, %arg1: i32, %arg2: i32) -> (i32, i32, i32) {
    %c0_i32 = arith.constant 0 : i32
    %c0_i32_0 = arith.constant 0 : i32
    return %arg0, %c0_i32, %arg2 : i32, i32, i32
  }
  func.func @transform_3(%arg0: i32, %arg1: i32, %arg2: i32) -> (i32, i32, i32) {
    %c0_i32 = arith.constant 0 : i32
    return %arg0, %arg1, %arg2 : i32, i32, i32
  }
}

</mosaic_0001>

<llo_original>
// kernel: tpu_custom_call.1
$region0: #{tpu_custom_call.1}
  #allocation0 [shape = 'u32[]', space=smem, size = 0x4, offset = 0x4, fixed_abs, tag = 'smem constant byte address 0x4 - core index']
  #allocation1 [shape = 'u32[144,128]{1,0:T(1,128)}', space=vmem, size = 0x12000, scoped, tag = 'internal scratch']
  #allocation2 [shape = 'f32[1]{0:T(128)S(6)}', space=smem, size = 0x200, scoped, tag = 'scoped memory for tpu_custom_call.1']
  %s0 = inlined_call_operand.<no memory space> [shape: f32[1], index: 0, kind: input, shape index: {}]
  %s1 = inlined_call_operand.hbm [shape: f32[2,4,256], index: 1, kind: input, shape index: {}]
  %s2 = inlined_call_operand.hbm [shape: f32[2,1,256], index: 2, kind: input, shape index: {}]
  %s3 = inlined_call_operand.hbm [shape: f32[2,4,256], index: 3, kind: output, shape index: {}]
  %s4 = sld [smem:[#allocation0]]
  $region53: #{tpu_custom_call.1} parent=0
    _
  %s6 = ssub.s32 1, %s4
  %s7 = scalar_select 0, %s6, %s4
  %8 = sst [smem:[#allocation2]] %s0
  $region1: #{tpu_custom_call.1} parent=0
    #allocation3 [shape = 'u8[8192]{0}', space=vmem, size = 0x2000, scoped, tag = 'input window, operand 1']
    #allocation4 [shape = 's32[2]{0}', space=sflag, size = 0x8, scoped, tag = 'scoped memory for tpu_custom_call.1']
    #allocation5 [shape = 's32[2]{0}', space=sflag, size = 0x8, scoped, tag = 'scoped memory for tpu_custom_call.1']
    #allocation6 [shape = 'u8[2048]{0}', space=vmem, size = 0x800, scoped, tag = 'input window, operand 2']
    #allocation7 [shape = 's32[2]{0}', space=sflag, size = 0x8, scoped, tag = 'scoped memory for tpu_custom_call.1']
    #allocation8 [shape = 'u8[8192]{0}', space=vmem, size = 0x2000, scoped, tag = 'output window, operand 0']
    %9 = vsyncpa [#allocation4], 0
    %s10 = scalar_lea.sflag [#allocation4], 1
    %11 = vsyncpa %s10, 0
    %12 = vsyncpa [#allocation7], 0
    %s13 = scalar_lea.sflag [#allocation7], 1
    %14 = vsyncpa %s13, 0
    %15 = vsyncpa [#allocation5], 0
    %s16 = scalar_lea.sflag [#allocation5], 1
    %17 = vsyncpa %s16, 0
    loop: start=0, step=1, limit=4
    $region2: #{tpu_custom_call.1} parent=1 // loop_pre_header
      _
    $region3: #{tpu_custom_call.1} parent=1 // loop_header
      %s19 = sphi 0, %s23
      %p20 = scmp.ge.s32.totalorder %s19, 4
      %s26 = sphi 0, %s45
      %s27 = sphi 0, %s41
      %s28 = sphi 0, %s37
      %s29 = sphi 0, %s26
      %s30 = sphi 0, %s27
      %s31 = sphi 0, %s28
      %s32 = sphi 0, %s29
      %s33 = sphi 0, %s30
      %s34 = sphi 0, %s31
      %s46 = sphi 0, %s46
      %s48 = sphi 0, %s46
      %s49 = sphi 0, %s48
      %s63 = sphi 0, %s49
      %s73 = sphi 0, %s75
      %s76 = sphi 0, %s73
      %s77 = sphi 0, %s76
      %s93 = sphi 0, %s77
      %s101 = sphi 0, %s103
      %s104 = sphi 0, %s101
      %s105 = sphi 0, %s104
      %s121 = sphi 0, %s105
      %s131 = sphi 0, %s133
      %s134 = sphi 0, %s131
      %s135 = sphi 0, %s134
      %s151 = sphi 0, %s135
    $region4: #{tpu_custom_call.1} parent=1 // loop_header_branch
      %22 = sbr.rel (%p20) target = $region8
    $region5: #{tpu_custom_call.1} parent=1 // loop_body
      %s24 = ssub.s32 %s19, 1
      %s25 = ssub.s32 %s19, 2
      %s35 = sadd.s32 1, %s28
      %p36 = scmp.ge.s32.totalorder %s35, 1
      %s37 = scalar_select %p36, 0, %s35
      %s38 = sadd.s32 1, %s27
      %s39 = scalar_select %p36, %s38, %s27
      %p40 = scmp.ge.s32.totalorder %s39, 1
      %s41 = scalar_select %p40, 0, %s39
      %s42 = sadd.s32 1, %s26
      %s43 = scalar_select %p40, %s42, %s26
      %p44 = scmp.ge.s32.totalorder %s43, 2
      %s45 = scalar_select %p44, 0, %s43
      %s47 = sadd.s32 %s46, 1
      %p50 = scmp.eq.s32.totalorder %s19, 1
      %p51 = scmp.ne.s32.totalorder %s46, %s48
      %p52 = scmp.eq.s32.totalorder %s19, 0
      %p53 = por %p51, %p52
      %p54 = scmp.ne.s32.totalorder %s46, %s48
      %p55 = scmp.eq.s32.totalorder %s24, 1
      %p56 = por %p54, %p55
      %p57 = scmp.ne.s32.totalorder %s48, %s49
      %p58 = scmp.eq.s32.totalorder %s24, 0
      %p59 = por %p57, %p58
      %p60 = scmp.ne.s32.totalorder %s48, %s49
      %p61 = scmp.eq.s32.totalorder %s25, 1
      %p62 = por %p60, %p61
      %p64 = scmp.ne.s32.totalorder %s49, %s63
      %p65 = scmp.eq.s32.totalorder %s25, 0
      %p66 = por %p64, %p65
      %s67 = ssub.s32 %s26, %s45
      %s68 = ssub.s32 %s27, %s41
      %s69 = sor.u32 %s67, %s68
      %s70 = ssub.s32 %s28, %s37
      %s71 = sor.u32 %s69, %s70
      %p72 = scmp.eq.s32.totalorder %s71, 0
      %s74 = sadd.s32 %s73, 1
      %s75 = scalar_select %p72, %s73, %s74
      %p78 = pneg %p72
      %p79 = scmp.eq.s32.totalorder %s19, 1
      %p80 = por %p78, %p79
      %p81 = scmp.ne.s32.totalorder %s73, %s76
      %p82 = scmp.eq.s32.totalorder %s19, 0
      %p83 = por %p81, %p82
      %p84 = scmp.ne.s32.totalorder %s73, %s76
      %p85 = scmp.eq.s32.totalorder %s24, 1
      %p86 = por %p84, %p85
      %p87 = scmp.ne.s32.totalorder %s76, %s77
      %p88 = scmp.eq.s32.totalorder %s24, 0
      %p89 = por %p87, %p88
      %p90 = scmp.ne.s32.totalorder %s76, %s77
      %p91 = scmp.eq.s32.totalorder %s25, 1
      %p92 = por %p90, %p91
      %p94 = scmp.ne.s32.totalorder %s77, %s93
      %p95 = scmp.eq.s32.totalorder %s25, 0
      %p96 = por %p94, %p95
      %s97 = ssub.s32 %s26, %s45
      %s98 = ssub.s32 %s28, %s37
      %s99 = sor.u32 %s97, %s98
      %p100 = scmp.eq.s32.totalorder %s99, 0
      %s102 = sadd.s32 %s101, 1
      %s103 = scalar_select %p100, %s101, %s102
      %p106 = pneg %p100
      %p107 = scmp.eq.s32.totalorder %s19, 1
      %p108 = por %p106, %p107
      %p109 = scmp.ne.s32.totalorder %s101, %s104
      %p110 = scmp.eq.s32.totalorder %s19, 0
      %p111 = por %p109, %p110
      %p112 = scmp.ne.s32.totalorder %s101, %s104
      %p113 = scmp.eq.s32.totalorder %s24, 1
      %p114 = por %p112, %p113
      %p115 = scmp.ne.s32.totalorder %s104, %s105
      %p116 = scmp.eq.s32.totalorder %s24, 0
      %p117 = por %p115, %p116
      %p118 = scmp.ne.s32.totalorder %s104, %s105
      %p119 = scmp.eq.s32.totalorder %s25, 1
      %p120 = por %p118, %p119
      %p122 = scmp.ne.s32.totalorder %s105, %s121
      %p123 = scmp.eq.s32.totalorder %s25, 0
      %p124 = por %p122, %p123
      %s125 = ssub.s32 %s26, %s45
      %s126 = ssub.s32 %s27, %s41
      %s127 = sor.u32 %s125, %s126
      %s128 = ssub.s32 %s28, %s37
      %s129 = sor.u32 %s127, %s128
      %p130 = scmp.eq.s32.totalorder %s129, 0
      %s132 = sadd.s32 %s131, 1
      %s133 = scalar_select %p130, %s131, %s132
      %p136 = pneg %p130
      %p137 = scmp.eq.s32.totalorder %s19, 1
      %p138 = por %p136, %p137
      %p139 = scmp.ne.s32.totalorder %s131, %s134
      %p140 = scmp.eq.s32.totalorder %s19, 0
      %p141 = por %p139, %p140
      %p142 = scmp.ne.s32.totalorder %s131, %s134
      %p143 = scmp.eq.s32.totalorder %s24, 1
      %p144 = por %p142, %p143
      %p145 = scmp.ne.s32.totalorder %s134, %s135
      %p146 = scmp.eq.s32.totalorder %s24, 0
      %p147 = por %p145, %p146
      %p148 = scmp.ne.s32.totalorder %s134, %s135
      %p149 = scmp.eq.s32.totalorder %s25, 1
      %p150 = por %p148, %p149
      %p152 = scmp.ne.s32.totalorder %s135, %s151
      %p153 = scmp.eq.s32.totalorder %s25, 0
      %p154 = por %p152, %p153
      %p155 = scmp.le.s32.totalorder 1, %s19
      %p156 = scmp.lt.s32.totalorder %s19, 3
      %p157 = pnand %p155, %p156
      %p158 = pneg %p157
      // Predicated region
      $region9: #{tpu_custom_call.1} parent=5 // pred_check
        _
      $region10: #{tpu_custom_call.1} parent=5 // pred_check_branch
        %160 = sbr.rel (%p157) target = $region12
      $region11: #{tpu_custom_call.1} parent=5 // pred_region
        %s161 = ssub.s32 %s19, 1
        // Predicated region
        $region13: #{tpu_custom_call.1} parent=11 // pred_check
          %p162 = pneg %p59
        $region14: #{tpu_custom_call.1} parent=11 // pred_check_branch
          %164 = sbr.rel (%p162) target = $region16
        $region15: #{tpu_custom_call.1} parent=11 // pred_region
          _
        $region16: #{tpu_custom_call.1} parent=11 // pred_fallthru
          _
      $region12: #{tpu_custom_call.1} parent=5 // pred_fallthru
        _
      %p165 = scmp.lt.s32.totalorder %s19, 2
      // Predicated region
      $region17: #{tpu_custom_call.1} parent=5 // pred_check
        %p166 = pneg %p165
      $region18: #{tpu_custom_call.1} parent=5 // pred_check_branch
        %168 = sbr.rel (%p166) target = $region20
      $region19: #{tpu_custom_call.1} parent=5 // pred_region
        // Predicated region
        $region21: #{tpu_custom_call.1} parent=19 // pred_check
          %p169 = pneg %p83
        $region22: #{tpu_custom_call.1} parent=19 // pred_check_branch
          %171 = sbr.rel (%p169) target = $region24
        $region23: #{tpu_custom_call.1} parent=19 // pred_region
          %s172 = sand.u32 %s73, 1
          %s173 = scalar_lea.sflag [#allocation4], %s172
          %s174 = sand.u32 %s73, 1
          %s175 = smul.addr %s174, 8
          %s176 = scalar_lea.vmem [#allocation3], %s175
          %s177 = smul.u32 2, %s28
          %s179 = ssub.s32 128, 128
          %180 = vsyncadd %s173, %s179
          %s181 = smul.addr %s27, 2
          %s182 = sadd.s32 %s177, %s181
          %s183 = smul.addr %s26, 2
          %s184 = sadd.s32 %s182, %s183
          %s185 = smul.addr %s184, 64
          %s186 = scalar_lea.hbm %s1, %s185
          %s188 = sshll.u32 %s176, 4
          %s189 = int_to_ptr.vmem [resolvable:$true] %s188
          %191 = dma.hbm_to_vmem [thread:$0]  %s186, 128, %s189, %s173
        $region24: #{tpu_custom_call.1} parent=19 // pred_fallthru
          _
        // Predicated region
        $region25: #{tpu_custom_call.1} parent=19 // pred_check
          %p192 = pneg %p111
        $region26: #{tpu_custom_call.1} parent=19 // pred_check_branch
          %194 = sbr.rel (%p192) target = $region28
        $region27: #{tpu_custom_call.1} parent=19 // pred_region
          %s195 = sand.u32 %s101, 1
          %s196 = scalar_lea.sflag [#allocation7], %s195
          %s197 = sand.u32 %s101, 1
          %s198 = smul.addr %s197, 2
          %s199 = scalar_lea.vmem [#allocation6], %s198
          %s200 = smul.u32 2, %s28
          %s202 = ssub.s32 32, 32
          %203 = vsyncadd %s196, %s202
          %s204 = smul.addr %s26, 2
          %s205 = sadd.s32 %s200, %s204
          %s206 = smul.addr %s205, 16
          %s207 = scalar_lea.hbm %s2, %s206
          %s209 = sshll.u32 %s199, 4
          %s210 = int_to_ptr.vmem [resolvable:$true] %s209
          %212 = dma.hbm_to_vmem [thread:$0]  %s207, 32, %s210, %s196
        $region28: #{tpu_custom_call.1} parent=19 // pred_fallthru
          _
      $region20: #{tpu_custom_call.1} parent=5 // pred_fallthru
        _
      %p213 = scmp.le.s32.totalorder 1, %s19
      %p214 = scmp.lt.s32.totalorder %s19, 3
      %p215 = pnand %p213, %p214
      %p216 = pneg %p215
      // Predicated region
      $region29: #{tpu_custom_call.1} parent=5 // pred_check
        _
      $region30: #{tpu_custom_call.1} parent=5 // pred_check_branch
        %218 = sbr.rel (%p215) target = $region32
      $region31: #{tpu_custom_call.1} parent=5 // pred_region
        %s219 = ssub.s32 %s19, 1
        %s220 = sand.u32 %s76, 1
        %s221 = scalar_lea.sflag [#allocation4], %s220
        %s222 = sand.u32 %s76, 1
        %s223 = smul.addr %s222, 8
        %s224 = scalar_lea.vmem [#allocation3], %s223
        // Predicated region
        $region33: #{tpu_custom_call.1} parent=31 // pred_check
          %p225 = pneg %p89
        $region34: #{tpu_custom_call.1} parent=31 // pred_check_branch
          %227 = sbr.rel (%p225) target = $region36
        $region35: #{tpu_custom_call.1} parent=31 // pred_region
          %228 = dma.done %s221, 128
        $region36: #{tpu_custom_call.1} parent=31 // pred_fallthru
          _
        %s229 = sand.u32 %s104, 1
        %s230 = scalar_lea.sflag [#allocation7], %s229
        %s231 = sand.u32 %s104, 1
        %s232 = smul.addr %s231, 2
        %s233 = scalar_lea.vmem [#allocation6], %s232
        // Predicated region
        $region37: #{tpu_custom_call.1} parent=31 // pred_check
          %p234 = pneg %p117
        $region38: #{tpu_custom_call.1} parent=31 // pred_check_branch
          %236 = sbr.rel (%p234) target = $region40
        $region39: #{tpu_custom_call.1} parent=31 // pred_region
          %237 = dma.done %s230, 32
        $region40: #{tpu_custom_call.1} parent=31 // pred_fallthru
          _
        %p238 = pneg %p59
        %p239 = pneg %p56
        %s240 = sand.u32 %s76, 1
        %s241 = scalar_lea.sflag [#allocation4], %s240
        %s242 = sand.u32 %s76, 1
        %s243 = smul.addr %s242, 8
        %s244 = scalar_lea.vmem [#allocation3], %s243
        %p245 = pneg %p89
        %p246 = pneg %p86
        %s247 = sand.u32 %s104, 1
        %s248 = scalar_lea.sflag [#allocation7], %s247
        %s249 = sand.u32 %s104, 1
        %s250 = smul.addr %s249, 2
        %s251 = scalar_lea.vmem [#allocation6], %s250
        %p252 = pneg %p117
        %p253 = pneg %p114
        %p254 = pneg %p147
        %p255 = pneg %p144
        %s256 = sand.u32 %s134, 1
        %s257 = scalar_lea.sflag [#allocation5], %s256
        %s258 = sand.u32 %s134, 1
        %s259 = smul.addr %s258, 8
        %s260 = scalar_lea.vmem [#allocation8], %s259
        %s261 = smul.u32 2, %s31
        %s262 = smul.u32 2, %s31
        %s263 = smul.u32 2, %s31
        %s264 = sld [smem:[#allocation2]]
        %v265 = vld [vmem:[%s224] sm:$0xff]
        %v266 = vld [vmem:[%s233] sm:$0x3]
        %v267 = vstv %s264
        %v268 = vmul.f32 %v267, %v266
        %v270 = vlaneseq
        %v271 = vshrl.u32 %v270, 7
        %v272 = vsub.s32 0, %v271
        %v273 = vrot.slane %v268, %v272
        %v274 = vlaneseq
        %v275 = vshrl.u32 %v274, 7
        %v276 = vsub.s32 1, %v275
        %v277 = vrot.slane %v268, %v276
        %v278 = vcombine.low %v273, %v277
        %v280 = vadd.f32 %v265, %v278
        %281 = vst [vmem:[%s260] sm:$0xff] %v280
        %s282 = sand.u32 %s134, 1
        %s283 = scalar_lea.sflag [#allocation5], %s282
        %s284 = sand.u32 %s134, 1
        %s285 = smul.addr %s284, 8
        %s286 = scalar_lea.vmem [#allocation8], %s285
        // Predicated region
        $region41: #{tpu_custom_call.1} parent=31 // pred_check
          %p287 = pneg %p144
        $region42: #{tpu_custom_call.1} parent=31 // pred_check_branch
          %289 = sbr.rel (%p287) target = $region44
        $region43: #{tpu_custom_call.1} parent=31 // pred_region
          %s290 = smul.u32 2, %s31
          %s292 = ssub.s32 128, 128
          %293 = vsyncadd %s283, %s292
          %s294 = smul.addr %s30, 2
          %s295 = sadd.s32 %s290, %s294
          %s296 = smul.addr %s29, 2
          %s297 = sadd.s32 %s295, %s296
          %s298 = smul.addr %s297, 64
          %s299 = scalar_lea.hbm %s3, %s298
          %s301 = sshll.u32 %s286, 4
          %s302 = int_to_ptr.vmem [resolvable:$true] %s301
          %304 = dma.vmem_to_hbm [thread:$0]  %s302, 128, %s299, %s283
        $region44: #{tpu_custom_call.1} parent=31 // pred_fallthru
          _
      $region32: #{tpu_custom_call.1} parent=5 // pred_fallthru
        _
      %p305 = scmp.le.s32.totalorder 2, %s19
      // Predicated region
      $region45: #{tpu_custom_call.1} parent=5 // pred_check
        %p306 = pneg %p305
      $region46: #{tpu_custom_call.1} parent=5 // pred_check_branch
        %308 = sbr.rel (%p306) target = $region48
      $region47: #{tpu_custom_call.1} parent=5 // pred_region
        %s309 = ssub.s32 %s19, 2
        // Predicated region
        $region49: #{tpu_custom_call.1} parent=47 // pred_check
          %p310 = pneg %p150
        $region50: #{tpu_custom_call.1} parent=47 // pred_check_branch
          %312 = sbr.rel (%p310) target = $region52
        $region51: #{tpu_custom_call.1} parent=47 // pred_region
          %s313 = sand.u32 %s135, 1
          %s314 = scalar_lea.sflag [#allocation5], %s313
          %s315 = sand.u32 %s135, 1
          %s316 = smul.addr %s315, 8
          %s317 = scalar_lea.vmem [#allocation8], %s316
          %318 = dma.done %s314, 128
        $region52: #{tpu_custom_call.1} parent=47 // pred_fallthru
          _
      $region48: #{tpu_custom_call.1} parent=5 // pred_fallthru
        _
    $region6: #{tpu_custom_call.1} parent=1 // loop_footer
      %s23 = sadd.s32 1, %s19
    $region7: #{tpu_custom_call.1} parent=1 // loop_footer_branch
      %18 = sbr.rel target = $region3
    $region8: #{tpu_custom_call.1} parent=1 // loop_exit
      _
    %319 = vsyncpa [#allocation4], 1
    %s320 = scalar_lea.sflag [#allocation4], 1
    %321 = vsyncpa %s320, 1
    %322 = vsyncpa [#allocation7], 1
    %s323 = scalar_lea.sflag [#allocation7], 1
    %324 = vsyncpa %s323, 1
    %325 = vsyncpa [#allocation5], 1
    %s326 = scalar_lea.sflag [#allocation5], 1
    %327 = vsyncpa %s326, 1

</llo_original>
